<compile_context>
chip_gen: v6e
topology: v6e:2x2x1
jax: 0.10.0
libtpu: 0.0.40
codegen_flags: <defaults>
</compile_context>

<pallas_src>
import jax
import jax.numpy as jnp
from jax.experimental import pallas as pl
from jax.experimental.pallas import tpu as pltpu


def _fused_kernel(x1_ref, x2i_ref, w_kn_ref, b_ref, o_ref):
    # v1 = x1 @ W.T + b   (Linear; W already transposed to (K, N) on host)
    v1 = jnp.dot(x1_ref[...], w_kn_ref[...],
                 preferred_element_type=jnp.float32) + b_ref[...]
    # v2 = tanh(v1)   (EUP transcendental, f32)
    v2 = jnp.tanh(v1)
    # v3 = v2 + x2 @ v2 == (x2 + I) @ v2  (x2i_ref holds x2 + I)
    o_ref[...] = jnp.dot(x2i_ref[...], v2,
                         preferred_element_type=jnp.float32)


def model_forward(x1, x2, w, b):
    B, K = x1.shape           # (8, 16)
    M = x2.shape[0]           # 8   (x2 cols must equal B)
    N = w.shape[0]            # 8
    assert x2.shape[1] == B and w.shape == (N, K) and b.shape == (1, N)
    assert M == B             # required for the addmm broadcast add / I fusion

    # Host-side prep (free for a static parameter / tiny input):
    w_kn = w.T                                  # (K, N): no in-kernel transpose
    x2_plus_i = x2 + jnp.eye(B, dtype=x2.dtype)  # fold residual add into matmul

    out = pl.pallas_call(
        _fused_kernel,
        out_shape=jax.ShapeDtypeStruct((M, N), jnp.float32),
        in_specs=[
            pl.BlockSpec(memory_space=pltpu.MemorySpace.VMEM),  # x1     (B, K)
            pl.BlockSpec(memory_space=pltpu.MemorySpace.VMEM),  # x2 + I (M, B)
            pl.BlockSpec(memory_space=pltpu.MemorySpace.VMEM),  # W.T    (K, N)
            pl.BlockSpec(memory_space=pltpu.MemorySpace.VMEM),  # b      (1, N)
        ],
        out_specs=pl.BlockSpec(memory_space=pltpu.MemorySpace.VMEM),
    )(x1, x2_plus_i, w_kn, b)
    return out


def reference_forward(x1, x2, w, b):
    v1 = x1 @ w.T + b
    v2 = jnp.tanh(v1)
    return v2 + x2 @ v2


if __name__ == "__main__":
    key = jax.random.PRNGKey(0)
    k1, k2, k3, k4 = jax.random.split(key, 4)

    B, K, N, M = 8, 16, 8, 8

    # Deterministic "parameters" (Linear(16, 8)): W:(8,16), b:(1,8)
    bound = 1.0 / (K ** 0.5)
    w = jax.random.uniform(k1, (N, K), jnp.float32, -bound, bound)
    b = jax.random.uniform(k2, (1, N), jnp.float32, -bound, bound)

    # Inputs
    x1 = jax.random.normal(k3, (B, K), jnp.float32)
    x2 = jax.random.normal(k4, (M, B), jnp.float32)

    out = model_forward(x1, x2, w, b)
    jax.block_until_ready(out)

    ref = reference_forward(x1, x2, w, b)
    assert out.shape == (M, N)
    assert jnp.allclose(out, ref, atol=1e-5, rtol=1e-5), "mismatch vs reference"

    print("KERNEL_OK")
</pallas_src>

<mosaic_0001>
module attributes {stable_mosaic.version = 11 : i64} {
  func.func @_fused_kernel(%arg0: memref<8x16xf32, #tpu.memory_space<vmem>>, %arg1: memref<8x8xf32, #tpu.memory_space<vmem>>, %arg2: memref<16x8xf32, #tpu.memory_space<vmem>>, %arg3: memref<1x8xf32, #tpu.memory_space<vmem>>, %arg4: memref<8x8xf32, #tpu.memory_space<vmem>>) attributes {dimension_semantics = [], scalar_prefetch = 0 : i64, scratch_operands = 0 : i64, tpu.core_type = #tpu.core_type<tc>} {
    %c0 = arith.constant 0 : index
    %c0_0 = arith.constant 0 : index
    %0 = vector.load %arg0[%c0, %c0_0] : memref<8x16xf32, #tpu.memory_space<vmem>>, vector<8x16xf32>
    %c0_1 = arith.constant 0 : index
    %c0_2 = arith.constant 0 : index
    %1 = vector.load %arg2[%c0_1, %c0_2] : memref<16x8xf32, #tpu.memory_space<vmem>>, vector<16x8xf32>
    %cst = arith.constant dense<0.000000e+00> : vector<8x8xf32>
    %2 = tpu.matmul %0, %1, %cst {dimension_numbers = #tpu.dot_dimension_numbers<[1], [0], [0], [1], [0, 0, 1, 1], [], []>} : vector<8x16xf32>, vector<16x8xf32>, vector<8x8xf32> -> vector<8x8xf32>
    %c0_3 = arith.constant 0 : index
    %c0_4 = arith.constant 0 : index
    %3 = vector.load %arg3[%c0_3, %c0_4] : memref<1x8xf32, #tpu.memory_space<vmem>>, vector<1x8xf32>
    %4 = vector.broadcast %3 : vector<1x8xf32> to vector<8x8xf32>
    %5 = arith.addf %2, %4 : vector<8x8xf32>
    %6 = math.tanh %5 : vector<8x8xf32>
    %c0_5 = arith.constant 0 : index
    %c0_6 = arith.constant 0 : index
    %7 = vector.load %arg1[%c0_5, %c0_6] : memref<8x8xf32, #tpu.memory_space<vmem>>, vector<8x8xf32>
    %cst_7 = arith.constant dense<0.000000e+00> : vector<8x8xf32>
    %8 = tpu.matmul %7, %6, %cst_7 {dimension_numbers = #tpu.dot_dimension_numbers<[1], [0], [0], [1], [0, 0, 1, 1], [], []>} : vector<8x8xf32>, vector<8x8xf32>, vector<8x8xf32> -> vector<8x8xf32>
    %c0_8 = arith.constant 0 : index
    %c0_9 = arith.constant 0 : index
    %9 = vector.load %arg4[%c0_8, %c0_9] : memref<8x8xf32, #tpu.memory_space<vmem>>, vector<8x8xf32>
    tpu.vector_store %arg4[%c0_8, %c0_9], %8 {strides = array<i32>} : memref<8x8xf32, #tpu.memory_space<vmem>>, vector<8x8xf32>,
    return
  }
}

</mosaic_0001>

<llo_original>
// kernel: tpu_custom_call.1
$region0: #{tpu_custom_call.1}
  #allocation0 [shape = 'u32[]', space=smem, size = 0x4, offset = 0x4, fixed_abs, tag = 'smem constant byte address 0x4 - core index']
  #allocation1 [shape = 'u32[144,128]{1,0:T(1,128)}', space=vmem, size = 0x12000, scoped, tag = 'internal scratch']
  %s0 = inlined_call_operand.vmem [shape: f32[8,16], index: 0, kind: input, shape index: {}]
  %s1 = inlined_call_operand.vmem [shape: f32[8,8], index: 1, kind: input, shape index: {}]
  %s2 = inlined_call_operand.vmem [shape: f32[16,8], index: 2, kind: input, shape index: {}]
  %s3 = inlined_call_operand.vmem [shape: f32[1,8], index: 3, kind: input, shape index: {}]
  %s4 = inlined_call_operand.hbm [shape: f32[8,8], index: 4, kind: output, shape index: {}]
  %s5 = sld [smem:[#allocation0]]
  $region26: #{tpu_custom_call.1} parent=0
    _
  %s7 = ssub.s32 1, %s5
  %s8 = scalar_select 0, %s7, %s5
  $region1: #{tpu_custom_call.1} parent=0
    #allocation2 [shape = 'u8[4096]{0}', space=vmem, size = 0x1000, scoped, tag = 'output window, operand 0, single buffered']
    #allocation3 [shape = 's32[1]{0}', space=sflag, size = 0x4, scoped, tag = 'scoped memory for tpu_custom_call.1']
    %9 = vsyncpa [#allocation3], 0
    // Predicated region
    $region2: #{tpu_custom_call.1} parent=1 // pred_check
      _
    $region3: #{tpu_custom_call.1} parent=1 // pred_check_branch
      %11 = sbr.rel (0) target = $region5
    $region4: #{tpu_custom_call.1} parent=1 // pred_region
      _
    $region5: #{tpu_custom_call.1} parent=1 // pred_fallthru
      _
    // Predicated region
    $region6: #{tpu_custom_call.1} parent=1 // pred_check
      _
    $region7: #{tpu_custom_call.1} parent=1 // pred_check_branch
      %13 = sbr.rel (0) target = $region9
    $region8: #{tpu_custom_call.1} parent=1 // pred_region
      _
    $region9: #{tpu_custom_call.1} parent=1 // pred_fallthru
      _
    // Predicated region
    $region10: #{tpu_custom_call.1} parent=1 // pred_check
      _
    $region11: #{tpu_custom_call.1} parent=1 // pred_check_branch
      %15 = sbr.rel (0) target = $region13
    $region12: #{tpu_custom_call.1} parent=1 // pred_region
      _
    $region13: #{tpu_custom_call.1} parent=1 // pred_fallthru
      _
    // Predicated region
    $region14: #{tpu_custom_call.1} parent=1 // pred_check
      _
    $region15: #{tpu_custom_call.1} parent=1 // pred_check_branch
      %17 = sbr.rel (0) target = $region17
    $region16: #{tpu_custom_call.1} parent=1 // pred_region
      _
    $region17: #{tpu_custom_call.1} parent=1 // pred_fallthru
      _
    %v18 = vld [vmem:[%s0] sm:$0xff]
    %v19 = vld [vmem:[%s2] sm:$0xff]
    %v20 = vld [vmem:[%s2 + $0x8] sm:$0xff]
    %v21 = vld [vmem:[%s3] sm:$0x1]
    %v23 = vlaneseq
    %v24 = vshrl.u32 %v23, 7
    %v25 = vsub.s32 0, %v24
    %v26 = vrot.slane %v21, %v25
    %vm28 = vcmask 130048
    %v30 = vsel %vm28, %v18, 0
    %32 = vmatprep.subr.mxu0 0.0
    %33 = vmatpush1.msra.mxu0 0.0
    %34 = vmatprep.subr.mxu0 0.0
    %35 = vmatpush1.msra.mxu0 0.0
    %36 = vmatprep.subr.mxu0 0.0
    %37 = vmatpush1.msra.mxu0 0.0
    %38 = vmatprep.subr.mxu0 0.0
    %39 = vmatpush1.msra.mxu0 0.0
    %40 = vmatprep.subr.mxu0 0.0
    %41 = vmatpush1.msra.mxu0 0.0
    %42 = vmatprep.subr.mxu0 0.0
    %43 = vmatpush1.msra.mxu0 0.0
    %44 = vmatprep.subr.mxu0 0.0
    %45 = vmatpush1.msra.mxu0 0.0
    %46 = vmatprep.subr.mxu0 0.0
    %47 = vmatpush1.msra.mxu0 0.0
    %48 = vmatprep.subr.mxu0 0.0
    %49 = vmatpush1.msra.mxu0 0.0
    %50 = vmatprep.subr.mxu0 0.0
    %51 = vmatpush1.msra.mxu0 0.0
    %52 = vmatprep.subr.mxu0 0.0
    %53 = vmatpush1.msra.mxu0 0.0
    %54 = vmatprep.subr.mxu0 0.0
    %55 = vmatpush1.msra.mxu0 0.0
    %56 = vmatprep.subr.mxu0 0.0
    %57 = vmatpush1.msra.mxu0 0.0
    %58 = vmatprep.subr.mxu0 0.0
    %59 = vmatpush1.msra.mxu0 0.0
    %60 = vmatprep.subr.mxu0 0.0
    %61 = vmatpush1.msra.mxu0 %v20
    %62 = vmatprep.subr.mxu0 0.0
    %63 = vmatpush1.msra.mxu0 %v19
    %64 = vmatprep.subr.mxu0 0.0
    %65 = vmatpush2.msra.mxu0 0.0
    %66 = vmatprep.subr.mxu0 0.0
    %67 = vmatpush2.msra.mxu0 0.0
    %68 = vmatprep.subr.mxu0 0.0
    %69 = vmatpush2.msra.mxu0 0.0
    %70 = vmatprep.subr.mxu0 0.0
    %71 = vmatpush2.msra.mxu0 0.0
    %72 = vmatprep.subr.mxu0 0.0
    %73 = vmatpush2.msra.mxu0 0.0
    %74 = vmatprep.subr.mxu0 0.0
    %75 = vmatpush2.msra.mxu0 0.0
    %76 = vmatprep.subr.mxu0 0.0
    %77 = vmatpush2.msra.mxu0 0.0
    %78 = vmatprep.subr.mxu0 0.0
    %79 = vmatpush2.msra.mxu0 0.0
    %80 = vmatprep.subr.mxu0 0.0
    %81 = vmatpush2.msra.mxu0 0.0
    %82 = vmatprep.subr.mxu0 0.0
    %83 = vmatpush2.msra.mxu0 0.0
    %84 = vmatprep.subr.mxu0 0.0
    %85 = vmatpush2.msra.mxu0 0.0
    %86 = vmatprep.subr.mxu0 0.0
    %87 = vmatpush2.msra.mxu0 0.0
    %88 = vmatprep.subr.mxu0 0.0
    %89 = vmatpush2.msra.mxu0 0.0
    %90 = vmatprep.subr.mxu0 0.0
    %91 = vmatpush2.msra.mxu0 0.0
    %92 = vmatprep.subr.mxu0 0.0
    %93 = vmatpush2.msra.mxu0 0.0
    %94 = vmatprep.subr.mxu0 0.0
    %95 = vmatpush2.msra.mxu0 0.0
    %96 = vmatprep.mubr.f32.mxu0 0.0
    %97 = vmatmul.mubr.f32.gmra.mxu0 %v30
    %v98 = vpop.f32.mrf.mxu0
    %v99 = vadd.f32 %v26, %v98
    %v100 = vpop.f32.mrf.mxu0
    %101 = vdwg.mxu0
    %v102 = vtanh.pop %v99
    %v103 = vld [vmem:[%s1] sm:$0xff]
    %vm104 = vcmask 64512
    %v106 = vsel %vm104, %v103, 0
    %108 = vmatprep.subr.mxu0 0.0
    %109 = vmatpush1.msra.mxu0 0.0
    %110 = vmatprep.subr.mxu0 0.0
    %111 = vmatpush1.msra.mxu0 0.0
    %112 = vmatprep.subr.mxu0 0.0
    %113 = vmatpush1.msra.mxu0 0.0
    %114 = vmatprep.subr.mxu0 0.0
    %115 = vmatpush1.msra.mxu0 0.0
    %116 = vmatprep.subr.mxu0 0.0
    %117 = vmatpush1.msra.mxu0 0.0
    %118 = vmatprep.subr.mxu0 0.0
    %119 = vmatpush1.msra.mxu0 0.0
    %120 = vmatprep.subr.mxu0 0.0
    %121 = vmatpush1.msra.mxu0 0.0
    %122 = vmatprep.subr.mxu0 0.0
    %123 = vmatpush1.msra.mxu0 0.0
    %124 = vmatprep.subr.mxu0 0.0
    %125 = vmatpush1.msra.mxu0 0.0
    %126 = vmatprep.subr.mxu0 0.0
    %127 = vmatpush1.msra.mxu0 0.0
    %128 = vmatprep.subr.mxu0 0.0
    %129 = vmatpush1.msra.mxu0 0.0
    %130 = vmatprep.subr.mxu0 0.0
    %131 = vmatpush1.msra.mxu0 0.0
    %132 = vmatprep.subr.mxu0 0.0
    %133 = vmatpush1.msra.mxu0 0.0
    %134 = vmatprep.subr.mxu0 0.0
    %135 = vmatpush1.msra.mxu0 0.0
    %136 = vmatprep.subr.mxu0 0.0
    %137 = vmatpush1.msra.mxu0 0.0
    %138 = vmatprep.subr.mxu0 0.0
    %139 = vmatpush1.msra.mxu0 %v102
    %140 = vmatprep.subr.mxu0 0.0
    %141 = vmatpush2.msra.mxu0 0.0
    %142 = vmatprep.subr.mxu0 0.0
    %143 = vmatpush2.msra.mxu0 0.0
    %144 = vmatprep.subr.mxu0 0.0
    %145 = vmatpush2.msra.mxu0 0.0
    %146 = vmatprep.subr.mxu0 0.0
    %147 = vmatpush2.msra.mxu0 0.0
    %148 = vmatprep.subr.mxu0 0.0
    %149 = vmatpush2.msra.mxu0 0.0
    %150 = vmatprep.subr.mxu0 0.0
    %151 = vmatpush2.msra.mxu0 0.0
    %152 = vmatprep.subr.mxu0 0.0
    %153 = vmatpush2.msra.mxu0 0.0
    %154 = vmatprep.subr.mxu0 0.0
    %155 = vmatpush2.msra.mxu0 0.0
    %156 = vmatprep.subr.mxu0 0.0
    %157 = vmatpush2.msra.mxu0 0.0
    %158 = vmatprep.subr.mxu0 0.0
    %159 = vmatpush2.msra.mxu0 0.0
    %160 = vmatprep.subr.mxu0 0.0
    %161 = vmatpush2.msra.mxu0 0.0
    %162 = vmatprep.subr.mxu0 0.0
    %163 = vmatpush2.msra.mxu0 0.0
    %164 = vmatprep.subr.mxu0 0.0
    %165 = vmatpush2.msra.mxu0 0.0
    %166 = vmatprep.subr.mxu0 0.0
    %167 = vmatpush2.msra.mxu0 0.0
    %168 = vmatprep.subr.mxu0 0.0
    %169 = vmatpush2.msra.mxu0 0.0
    %170 = vmatprep.subr.mxu0 0.0
    %171 = vmatpush2.msra.mxu0 0.0
    %172 = vmatprep.mubr.f32.mxu0 0.0
    %173 = vmatmul.mubr.f32.gmra.mxu0 %v106
    %v174 = vpop.f32.mrf.mxu0
    %v175 = vadd.f32 0.0, %v174
    %v176 = vpop.f32.mrf.mxu0
    %177 = vdwg.mxu0
    %178 = vst.msk [vmem:[#allocation2] sm:$0xff] %vm104, %v175
    // Predicated region
    $region18: #{tpu_custom_call.1} parent=1 // pred_check
      _
    $region19: #{tpu_custom_call.1} parent=1 // pred_check_branch
      %180 = sbr.rel (0) target = $region21
    $region20: #{tpu_custom_call.1} parent=1 // pred_region
      %s182 = ssub.s32 128, 128
      %183 = vsyncadd [#allocation3], %s182
      %s185 = sshll.u32 [#allocation2], 4
      %s186 = int_to_ptr.vmem [resolvable:$true] %s185
      %188 = dma.vmem_to_hbm [thread:$0]  %s186, 128, %s4, [#allocation3]
    $region21: #{tpu_custom_call.1} parent=1 // pred_fallthru
      _
    // Predicated region
    $region22: #{tpu_custom_call.1} parent=1 // pred_check
      _
    $region23: #{tpu_custom_call.1} parent=1 // pred_check_branch
      %190 = sbr.rel (0) target = $region25
    $region24: #{tpu_custom_call.1} parent=1 // pred_region
      %191 = dma.done [#allocation3], 128
    $region25: #{tpu_custom_call.1} parent=1 // pred_fallthru
      _
    %192 = vsyncpa [#allocation3], 1

</llo_original>
